<compile_context>
chip_gen: v6e
topology: v6e:2x2x1
jax: 0.10.0
libtpu: 0.0.40
codegen_flags: <defaults>
</compile_context>

<pallas_src>
import functools

import jax
import jax.numpy as jnp
from jax.experimental import pallas as pl
from jax.experimental.pallas import tpu as pltpu


def _qc_fused_kernel(s_ref, a_ref, l1_ref, l2_ref, l3_ref, o_ref):
    # s_ref: (bt, S) f32, a_ref: (bt, A) f32
    # l1_ref: (S+A+1, E*H)  = [w1 ; b1]      (weight dtype, f32 or bf16)
    # l2_ref: (E*H+1, E*H)  = [w2_blockdiag ; b2]
    # l3_ref: (E*H+1, E)    = [w3_blockcol ; b3]
    # o_ref : (bt, E) f32
    S = s_ref.shape[1]
    A = a_ref.shape[1]
    SA = S + A
    EH = l2_ref.shape[1]
    wdt = l1_ref.dtype

    # Merge the two layer-1 matmuls: lane-concat state|action (XLU, cheap).
    xu = jnp.concatenate([s_ref[...], a_ref[...]], axis=-1)       # (bt, SA) f32

    # Layer 1  (bias is the last row of the packed array; static slices = views)
    w1 = l1_ref[:SA, :]
    b1 = l1_ref[SA:SA + 1, :].astype(jnp.float32)
    h1 = jnp.dot(xu.astype(wdt), w1, preferred_element_type=jnp.float32) + b1
    h1 = h1 * jax.nn.sigmoid(h1)                                  # SiLU in f32

    # Layer 2 (block-diagonal over ensemble members)
    w2 = l2_ref[:EH, :]
    b2 = l2_ref[EH:EH + 1, :].astype(jnp.float32)
    h2 = jnp.dot(h1.astype(wdt), w2, preferred_element_type=jnp.float32) + b2
    h2 = h2 * jax.nn.sigmoid(h2)                                  # SiLU in f32

    # Layer 3 (block-column -> one scalar per ensemble member)
    w3 = l3_ref[:EH, :]
    b3 = l3_ref[EH:EH + 1, :].astype(jnp.float32)
    out = jnp.dot(h2.astype(wdt), w3, preferred_element_type=jnp.float32) + b3

    o_ref[...] = out.astype(o_ref.dtype)                          # (bt, E)


def pack_qc_params(params, weight_dtype=jnp.float32):
    """One-time repack of torch-layout ensemble params into the lane-packed layout.

    Each layer becomes a single [W ; b] array (bias = last row) so the kernel
    needs only one DMA per layer. Use weight_dtype=jnp.bfloat16 on v6e/v7x to
    halve weight DMA bytes (accumulation stays f32 inside the kernel).
    """
    w1, b1 = params["w1"], params["b1"]   # (E, D, H), (E, H)
    w2, b2 = params["w2"], params["b2"]   # (E, H, H), (E, H)
    w3, b3 = params["w3"], params["b3"]   # (E, H, 1), (E, 1)
    E, D, H = w1.shape
    EH = E * H

    # Layer 1: (E, D, H) -> (D, E*H), append bias row.
    w1p = jnp.transpose(w1, (1, 0, 2)).reshape(D, EH)
    l1 = jnp.concatenate([w1p, b1.reshape(1, EH)], axis=0)        # (D+1, EH)

    eye = jnp.eye(E, dtype=w2.dtype)

    # Layer 2: block-diagonal (E*H, E*H), append bias row.
    # NOTE(guardrail): dense block-diagonal packing is free while E*H <= ~256
    # (one MXU tile either way); if E*H grows to 512+, switch to a grid over E
    # with per-member (H, H) blocks -- this dense form wastes (E-1)/E of the
    # MAC work and E*H^2 weight bytes.
    w2p = jnp.einsum("ef,eij->eifj", eye, w2).reshape(EH, EH)
    l2 = jnp.concatenate([w2p, b2.reshape(1, EH)], axis=0)        # (EH+1, EH)

    # Layer 3: block-column (E*H, E), append bias row.
    w3p = (eye[:, None, :] * w3).reshape(EH, E)                   # (E,1,E)*(E,H,1)
    l3 = jnp.concatenate([w3p, b3.reshape(1, E)], axis=0)         # (EH+1, E)

    return dict(l1=l1.astype(weight_dtype),
                l2=l2.astype(weight_dtype),
                l3=l3.astype(weight_dtype))


@functools.partial(jax.jit, static_argnames=("batch_tile",))
def qc_network_forward(state, action, packed, batch_tile=256):
    """Fused Pallas forward. state: (B,S), action: (B,A). Returns (E, B, 1)."""
    B, S = state.shape
    A = action.shape[1]
    l1, l2, l3 = packed["l1"], packed["l2"], packed["l3"]
    SA = S + A
    EH = l2.shape[1]
    E = l3.shape[1]

    # Batch tiling: single grid step for small B; streamed tiles for large B
    # (weights stay resident in VMEM via constant index maps).
    bt = B if B <= batch_tile else batch_tile
    Bp = pl.cdiv(B, bt) * bt
    if Bp != B:
        pad = Bp - B
        state = jnp.pad(state, ((0, pad), (0, 0)))
        action = jnp.pad(action, ((0, pad), (0, 0)))

    out = pl.pallas_call(
        _qc_fused_kernel,
        out_shape=jax.ShapeDtypeStruct((Bp, E), jnp.float32),
        grid=(Bp // bt,),
        in_specs=[
            pl.BlockSpec((bt, S), lambda i: (i, 0)),          # state tile
            pl.BlockSpec((bt, A), lambda i: (i, 0)),          # action tile
            pl.BlockSpec((SA + 1, EH), lambda i: (0, 0)),     # layer-1 [W;b] (resident)
            pl.BlockSpec((EH + 1, EH), lambda i: (0, 0)),     # layer-2 [W;b] (resident)
            pl.BlockSpec((EH + 1, E), lambda i: (0, 0)),      # layer-3 [W;b] (resident)
        ],
        out_specs=pl.BlockSpec((bt, E), lambda i: (i, 0)),
        compiler_params=pltpu.CompilerParams(
            dimension_semantics=("parallel",)),                # v7x: split batch over 2 TCs
    )(state, action, l1, l2, l3)

    out = out[:B]
    # (B, E) -> (E, B, 1); fused into this jit'ed executable (no extra dispatch).
    return jnp.transpose(out)[:, :, None]


def init_qc_params(key, state_size, action_size, ensemble_size, hidden_size):
    """Deterministic init mirroring torch's truncated_normal_init:
    weights ~ TruncNormal(0, std=1/(2*sqrt(in_features)), trunc at +/-2std), biases 0."""
    d_in = state_size + action_size
    k1, k2, k3 = jax.random.split(key, 3)

    def trunc(k, shape, in_features):
        std = 1.0 / (2.0 * jnp.sqrt(jnp.float32(in_features)))
        return jax.random.truncated_normal(k, -2.0, 2.0, shape, jnp.float32) * std

    return dict(
        w1=trunc(k1, (ensemble_size, d_in, hidden_size), d_in),
        b1=jnp.zeros((ensemble_size, hidden_size), jnp.float32),
        w2=trunc(k2, (ensemble_size, hidden_size, hidden_size), hidden_size),
        b2=jnp.zeros((ensemble_size, hidden_size), jnp.float32),
        w3=trunc(k3, (ensemble_size, hidden_size, 1), hidden_size),
        b3=jnp.zeros((ensemble_size, 1), jnp.float32),
    )


def qc_network_reference(state, action, params):
    """Pure-JAX reference (mirrors the torch forward exactly, torch layout)."""
    xu = jnp.concatenate([state, action], axis=-1)
    x = jnp.broadcast_to(xu[None], (params["w1"].shape[0],) + xu.shape)
    h1 = jax.nn.silu(jnp.einsum("ebd,edh->ebh", x, params["w1"]) + params["b1"][:, None, :])
    h2 = jax.nn.silu(jnp.einsum("ebd,edh->ebh", h1, params["w2"]) + params["b2"][:, None, :])
    return jnp.einsum("ebd,edh->ebh", h2, params["w3"]) + params["b3"][:, None, :]


if __name__ == "__main__":
    # Small shapes consistent with the module's forward; E*H = 128 (one lane width).
    B = 8            # batch
    STATE = 12       # state_size
    ACTION = 4       # action_size
    E = 4            # ensemble_size
    H = 32           # hidden_size

    key = jax.random.PRNGKey(0)
    kp, ks, ka = jax.random.split(key, 3)

    params = init_qc_params(kp, STATE, ACTION, E, H)
    state = jax.random.normal(ks, (B, STATE), jnp.float32)
    action = jax.random.normal(ka, (B, ACTION), jnp.float32)

    ref = qc_network_reference(state, action, params)

    # f32-weight path (exact vs reference).
    packed_f32 = pack_qc_params(params)                       # default f32
    out = jax.block_until_ready(qc_network_forward(state, action, packed_f32))
    assert out.shape == (E, B, 1), out.shape
    err_f32 = float(jnp.max(jnp.abs(out - ref)))
    assert jnp.allclose(out, ref, atol=2e-5, rtol=2e-5), err_f32

    # bf16-weight path (v6e/v7x DMA/VMEM saving; f32 accumulation -> loose tol).
    packed_bf16 = pack_qc_params(params, weight_dtype=jnp.bfloat16)
    out_bf16 = jax.block_until_ready(qc_network_forward(state, action, packed_bf16))
    err_bf16 = float(jnp.max(jnp.abs(out_bf16 - ref)))
    assert jnp.allclose(out_bf16, ref, atol=5e-2, rtol=0.0), err_bf16

    print("KERNEL_OK")
</pallas_src>

<mosaic_0001>
module attributes {stable_mosaic.version = 11 : i64} {
  func.func @_qc_fused_kernel(%arg0: i32, %arg1: memref<8x12xf32, #tpu.memory_space<vmem>>, %arg2: memref<8x4xf32, #tpu.memory_space<vmem>>, %arg3: memref<17x128xf32, #tpu.memory_space<vmem>>, %arg4: memref<129x128xf32, #tpu.memory_space<vmem>>, %arg5: memref<129x4xf32, #tpu.memory_space<vmem>>, %arg6: memref<8x4xf32, #tpu.memory_space<vmem>>) attributes {dimension_semantics = [#tpu.dimension_semantics<parallel>], iteration_bounds = array<i64: 1>, scalar_prefetch = 0 : i64, scratch_operands = 0 : i64, tpu.core_type = #tpu.core_type<tc>, window_params = [{transform_indices = @transform_0, window_bounds = array<i64: 8, 12>}, {transform_indices = @transform_1, window_bounds = array<i64: 8, 4>}, {pipeline_mode = #tpu.pipeline_mode<synchronous>, transform_indices = @transform_2, window_bounds = array<i64: 17, 128>}, {pipeline_mode = #tpu.pipeline_mode<synchronous>, transform_indices = @transform_3, window_bounds = array<i64: 129, 128>}, {pipeline_mode = #tpu.pipeline_mode<synchronous>, transform_indices = @transform_4, window_bounds = array<i64: 129, 4>}, {transform_indices = @transform_5, window_bounds = array<i64: 8, 4>}]} {
    %c0 = arith.constant 0 : index
    %c0_0 = arith.constant 0 : index
    %0 = vector.load %arg1[%c0, %c0_0] : memref<8x12xf32, #tpu.memory_space<vmem>>, vector<8x12xf32>
    %c0_1 = arith.constant 0 : index
    %c0_2 = arith.constant 0 : index
    %1 = vector.load %arg2[%c0_1, %c0_2] : memref<8x4xf32, #tpu.memory_space<vmem>>, vector<8x4xf32>
    %2 = tpu.concatenate %0, %1 in 1 : vector<8x12xf32>, vector<8x4xf32> -> vector<8x16xf32>
    %c0_3 = arith.constant 0 : index
    %c0_4 = arith.constant 0 : index
    %3 = vector.load %arg3[%c0_3, %c0_4] : memref<17x128xf32, #tpu.memory_space<vmem>>, vector<16x128xf32>
    %c16 = arith.constant 16 : index
    %c0_5 = arith.constant 0 : index
    %4 = vector.load %arg3[%c16, %c0_5] : memref<17x128xf32, #tpu.memory_space<vmem>>, vector<1x128xf32>
    %cst = arith.constant dense<0.000000e+00> : vector<8x128xf32>
    %5 = tpu.matmul %2, %3, %cst {dimension_numbers = #tpu.dot_dimension_numbers<[1], [0], [0], [1], [0, 0, 1, 1], [], []>} : vector<8x16xf32>, vector<16x128xf32>, vector<8x128xf32> -> vector<8x128xf32>
    %6 = vector.broadcast %4 : vector<1x128xf32> to vector<8x128xf32>
    %7 = arith.addf %5, %6 : vector<8x128xf32>
    %8 = arith.negf %7 : vector<8x128xf32>
    %9 = math.exp %8 : vector<8x128xf32>
    %cst_6 = arith.constant 1.000000e+00 : f32
    %10 = vector.broadcast %cst_6 : f32 to vector<8x128xf32>
    %11 = arith.addf %10, %9 : vector<8x128xf32>
    %12 = arith.divf %10, %11 : vector<8x128xf32>
    %13 = arith.mulf %7, %12 : vector<8x128xf32>
    %c0_7 = arith.constant 0 : index
    %c0_8 = arith.constant 0 : index
    %14 = vector.load %arg4[%c0_7, %c0_8] : memref<129x128xf32, #tpu.memory_space<vmem>>, vector<128x128xf32>
    %c128 = arith.constant 128 : index
    %c0_9 = arith.constant 0 : index
    %15 = vector.load %arg4[%c128, %c0_9] : memref<129x128xf32, #tpu.memory_space<vmem>>, vector<1x128xf32>
    %cst_10 = arith.constant dense<0.000000e+00> : vector<8x128xf32>
    %16 = tpu.matmul %13, %14, %cst_10 {dimension_numbers = #tpu.dot_dimension_numbers<[1], [0], [0], [1], [0, 0, 1, 1], [], []>} : vector<8x128xf32>, vector<128x128xf32>, vector<8x128xf32> -> vector<8x128xf32>
    %17 = vector.broadcast %15 : vector<1x128xf32> to vector<8x128xf32>
    %18 = arith.addf %16, %17 : vector<8x128xf32>
    %19 = arith.negf %18 : vector<8x128xf32>
    %20 = math.exp %19 : vector<8x128xf32>
    %cst_11 = arith.constant 1.000000e+00 : f32
    %21 = vector.broadcast %cst_11 : f32 to vector<8x128xf32>
    %22 = arith.addf %21, %20 : vector<8x128xf32>
    %23 = arith.divf %21, %22 : vector<8x128xf32>
    %24 = arith.mulf %18, %23 : vector<8x128xf32>
    %c0_12 = arith.constant 0 : index
    %c0_13 = arith.constant 0 : index
    %25 = vector.load %arg5[%c0_12, %c0_13] : memref<129x4xf32, #tpu.memory_space<vmem>>, vector<128x4xf32>
    %c128_14 = arith.constant 128 : index
    %c0_15 = arith.constant 0 : index
    %26 = vector.load %arg5[%c128_14, %c0_15] : memref<129x4xf32, #tpu.memory_space<vmem>>, vector<1x4xf32>
    %cst_16 = arith.constant dense<0.000000e+00> : vector<8x4xf32>
    %27 = tpu.matmul %24, %25, %cst_16 {dimension_numbers = #tpu.dot_dimension_numbers<[1], [0], [0], [1], [0, 0, 1, 1], [], []>} : vector<8x128xf32>, vector<128x4xf32>, vector<8x4xf32> -> vector<8x4xf32>
    %28 = vector.broadcast %26 : vector<1x4xf32> to vector<8x4xf32>
    %29 = arith.addf %27, %28 : vector<8x4xf32>
    %c0_17 = arith.constant 0 : index
    %c0_18 = arith.constant 0 : index
    %30 = vector.load %arg6[%c0_17, %c0_18] : memref<8x4xf32, #tpu.memory_space<vmem>>, vector<8x4xf32>
    tpu.vector_store %arg6[%c0_17, %c0_18], %29 {strides = array<i32>} : memref<8x4xf32, #tpu.memory_space<vmem>>, vector<8x4xf32>,
    return
  }
  func.func @transform_0(%arg0: i32) -> (i32, i32) {
    %c0_i32 = arith.constant 0 : i32
    %c0_i32_0 = arith.constant 0 : i32
    return %arg0, %c0_i32 : i32, i32
  }
  func.func @transform_1(%arg0: i32) -> (i32, i32) {
    %c0_i32 = arith.constant 0 : i32
    %c0_i32_0 = arith.constant 0 : i32
    return %arg0, %c0_i32 : i32, i32
  }
  func.func @transform_2(%arg0: i32) -> (i32, i32) {
    %c0_i32 = arith.constant 0 : i32
    %c0_i32_0 = arith.constant 0 : i32
    %c0_i32_1 = arith.constant 0 : i32
    return %c0_i32, %c0_i32_0 : i32, i32
  }
  func.func @transform_3(%arg0: i32) -> (i32, i32) {
    %c0_i32 = arith.constant 0 : i32
    %c0_i32_0 = arith.constant 0 : i32
    %c0_i32_1 = arith.constant 0 : i32
    return %c0_i32, %c0_i32_0 : i32, i32
  }
  func.func @transform_4(%arg0: i32) -> (i32, i32) {
    %c0_i32 = arith.constant 0 : i32
    %c0_i32_0 = arith.constant 0 : i32
    %c0_i32_1 = arith.constant 0 : i32
    return %c0_i32, %c0_i32_0 : i32, i32
  }
  func.func @transform_5(%arg0: i32) -> (i32, i32) {
    %c0_i32 = arith.constant 0 : i32
    %c0_i32_0 = arith.constant 0 : i32
    return %arg0, %c0_i32 : i32, i32
  }
}

</mosaic_0001>

<llo_original>
// kernel: qc_network_forward.1
$region0: #{qc_network_forward.1}
  #allocation0 [shape = 'u32[]', space=smem, size = 0x4, offset = 0x4, fixed_abs, tag = 'smem constant byte address 0x4 - core index']
  #allocation1 [shape = 'u32[144,128]{1,0:T(1,128)}', space=vmem, size = 0x12000, scoped, tag = 'internal scratch']
  %s0 = inlined_call_operand.hbm [shape: f32[8,12], index: 0, kind: input, shape index: {}]
  %s1 = inlined_call_operand.vmem [shape: f32[8,4], index: 1, kind: input, shape index: {}]
  %s2 = inlined_call_operand.vmem [shape: f32[17,128], index: 2, kind: input, shape index: {}]
  %s3 = inlined_call_operand.vmem [shape: f32[129,128], index: 3, kind: input, shape index: {}]
  %s4 = inlined_call_operand.vmem [shape: f32[129,4], index: 4, kind: input, shape index: {}]
  %s5 = inlined_call_operand.vmem [shape: f32[8,4], index: 5, kind: output, shape index: {}]
  %s6 = sld [smem:[#allocation0]]
  $region34: #{qc_network_forward.1} parent=0
    _
  %s8 = ssub.s32 1, %s6
  %s9 = scalar_select 0, %s8, %s6
  $region1: #{qc_network_forward.1} parent=0
    #allocation2 [shape = 'u8[4096]{0}', space=vmem, size = 0x1000, scoped, tag = 'input window, operand 0, single buffered']
    #allocation3 [shape = 's32[1]{0}', space=sflag, size = 0x4, scoped, tag = 'scoped memory for qc_network_forward.1']
    %10 = vsyncpa [#allocation3], 0
    // Predicated region
    $region2: #{qc_network_forward.1} parent=1 // pred_check
      _
    $region3: #{qc_network_forward.1} parent=1 // pred_check_branch
      %12 = sbr.rel (0) target = $region5
    $region4: #{qc_network_forward.1} parent=1 // pred_region
      %s14 = ssub.s32 128, 128
      %15 = vsyncadd [#allocation3], %s14
      %s17 = sshll.u32 [#allocation2], 4
      %s18 = int_to_ptr.vmem [resolvable:$true] %s17
      %20 = dma.hbm_to_vmem [thread:$0]  %s0, 128, %s18, [#allocation3]
    $region5: #{qc_network_forward.1} parent=1 // pred_fallthru
      _
    // Predicated region
    $region6: #{qc_network_forward.1} parent=1 // pred_check
      _
    $region7: #{qc_network_forward.1} parent=1 // pred_check_branch
      %22 = sbr.rel (0) target = $region9
    $region8: #{qc_network_forward.1} parent=1 // pred_region
      _
    $region9: #{qc_network_forward.1} parent=1 // pred_fallthru
      _
    // Predicated region
    $region10: #{qc_network_forward.1} parent=1 // pred_check
      _
    $region11: #{qc_network_forward.1} parent=1 // pred_check_branch
      %24 = sbr.rel (0) target = $region13
    $region12: #{qc_network_forward.1} parent=1 // pred_region
      _
    $region13: #{qc_network_forward.1} parent=1 // pred_fallthru
      _
    // Predicated region
    $region14: #{qc_network_forward.1} parent=1 // pred_check
      _
    $region15: #{qc_network_forward.1} parent=1 // pred_check_branch
      %26 = sbr.rel (0) target = $region17
    $region16: #{qc_network_forward.1} parent=1 // pred_region
      _
    $region17: #{qc_network_forward.1} parent=1 // pred_fallthru
      _
    // Predicated region
    $region18: #{qc_network_forward.1} parent=1 // pred_check
      _
    $region19: #{qc_network_forward.1} parent=1 // pred_check_branch
      %28 = sbr.rel (0) target = $region21
    $region20: #{qc_network_forward.1} parent=1 // pred_region
      _
    $region21: #{qc_network_forward.1} parent=1 // pred_fallthru
      _
    // Predicated region
    $region22: #{qc_network_forward.1} parent=1 // pred_check
      _
    $region23: #{qc_network_forward.1} parent=1 // pred_check_branch
      %30 = sbr.rel (0) target = $region25
    $region24: #{qc_network_forward.1} parent=1 // pred_region
      %31 = dma.done [#allocation3], 128
    $region25: #{qc_network_forward.1} parent=1 // pred_fallthru
      _
    %v32 = vld [vmem:[#allocation2] sm:$0xff]
    %v33 = vld [vmem:[%s1] sm:$0xff]
    %35 = vrot.lane.b32.xlu0 %v33, 12
    %v36 = vpop.permute.xlu0 %35
    %vm38 = vcmask 97280
    %v39 = vsel %vm38, %v32, %v36
    %v40 = vld [vmem:[%s2] sm:$0xff]
    %v41 = vld [vmem:[%s2 + $0x8] sm:$0xff]
    %v42 = vld [vmem:[%s2 + $0x10] sm:$0x1]
    %v43 = vlaneseq
    %v44 = vshrl.u32 %v43, 7
    %v45 = vsub.s32 0, %v44
    %v46 = vrot.slane %v42, %v45
    %vm47 = vcmask 130048
    %v49 = vsel %vm47, %v39, 0
    %51 = vmatprep.subr.mxu0 0.0
    %52 = vmatpush1.msra.mxu0 0.0
    %53 = vmatprep.subr.mxu0 0.0
    %54 = vmatpush1.msra.mxu0 0.0
    %55 = vmatprep.subr.mxu0 0.0
    %56 = vmatpush1.msra.mxu0 0.0
    %57 = vmatprep.subr.mxu0 0.0
    %58 = vmatpush1.msra.mxu0 0.0
    %59 = vmatprep.subr.mxu0 0.0
    %60 = vmatpush1.msra.mxu0 0.0
    %61 = vmatprep.subr.mxu0 0.0
    %62 = vmatpush1.msra.mxu0 0.0
    %63 = vmatprep.subr.mxu0 0.0
    %64 = vmatpush1.msra.mxu0 0.0
    %65 = vmatprep.subr.mxu0 0.0
    %66 = vmatpush1.msra.mxu0 0.0
    %67 = vmatprep.subr.mxu0 0.0
    %68 = vmatpush1.msra.mxu0 0.0
    %69 = vmatprep.subr.mxu0 0.0
    %70 = vmatpush1.msra.mxu0 0.0
    %71 = vmatprep.subr.mxu0 0.0
    %72 = vmatpush1.msra.mxu0 0.0
    %73 = vmatprep.subr.mxu0 0.0
    %74 = vmatpush1.msra.mxu0 0.0
    %75 = vmatprep.subr.mxu0 0.0
    %76 = vmatpush1.msra.mxu0 0.0
    %77 = vmatprep.subr.mxu0 0.0
    %78 = vmatpush1.msra.mxu0 0.0
    %79 = vmatprep.subr.mxu0 0.0
    %80 = vmatpush1.msra.mxu0 %v41
    %81 = vmatprep.subr.mxu0 0.0
    %82 = vmatpush1.msra.mxu0 %v40
    %83 = vmatprep.subr.mxu0 0.0
    %84 = vmatpush2.msra.mxu0 0.0
    %85 = vmatprep.subr.mxu0 0.0
    %86 = vmatpush2.msra.mxu0 0.0
    %87 = vmatprep.subr.mxu0 0.0
    %88 = vmatpush2.msra.mxu0 0.0
    %89 = vmatprep.subr.mxu0 0.0
    %90 = vmatpush2.msra.mxu0 0.0
    %91 = vmatprep.subr.mxu0 0.0
    %92 = vmatpush2.msra.mxu0 0.0
    %93 = vmatprep.subr.mxu0 0.0
    %94 = vmatpush2.msra.mxu0 0.0
    %95 = vmatprep.subr.mxu0 0.0
    %96 = vmatpush2.msra.mxu0 0.0
    %97 = vmatprep.subr.mxu0 0.0
    %98 = vmatpush2.msra.mxu0 0.0
    %99 = vmatprep.subr.mxu0 0.0
    %100 = vmatpush2.msra.mxu0 0.0
    %101 = vmatprep.subr.mxu0 0.0
    %102 = vmatpush2.msra.mxu0 0.0
    %103 = vmatprep.subr.mxu0 0.0
    %104 = vmatpush2.msra.mxu0 0.0
    %105 = vmatprep.subr.mxu0 0.0
    %106 = vmatpush2.msra.mxu0 0.0
    %107 = vmatprep.subr.mxu0 0.0
    %108 = vmatpush2.msra.mxu0 0.0
    %109 = vmatprep.subr.mxu0 0.0
    %110 = vmatpush2.msra.mxu0 0.0
    %111 = vmatprep.subr.mxu0 0.0
    %112 = vmatpush2.msra.mxu0 0.0
    %113 = vmatprep.subr.mxu0 0.0
    %114 = vmatpush2.msra.mxu0 0.0
    %115 = vmatprep.mubr.f32.mxu0 0.0
    %116 = vmatmul.mubr.f32.gmra.mxu0 %v49
    %v117 = vpop.f32.mrf.mxu0
    %v118 = vadd.f32 %v46, %v117
    %v119 = vpop.f32.mrf.mxu0
    %120 = vdwg.mxu0
    %v121 = vxor.u32 %v118, 2147483648
    %v122 = vmul.f32 %v121, 1.442695
    %v123 = vpow.pop %v122
    %v124 = vadd.f32 %v123, 1.0
    %v125 = vrcp.pop %v124
    %v126 = vmul.f32 1.0, %v125
    %v127 = vmul.f32 %v118, %v126
    %v128 = vld [vmem:[%s3] sm:$0xff]
    %v129 = vld [vmem:[%s3 + $0x8] sm:$0xff]
    %v130 = vld [vmem:[%s3 + $0x10] sm:$0xff]
    %v131 = vld [vmem:[%s3 + $0x18] sm:$0xff]
    %v132 = vld [vmem:[%s3 + $0x20] sm:$0xff]
    %v133 = vld [vmem:[%s3 + $0x28] sm:$0xff]
    %v134 = vld [vmem:[%s3 + $0x30] sm:$0xff]
    %v135 = vld [vmem:[%s3 + $0x38] sm:$0xff]
    %v136 = vld [vmem:[%s3 + $0x40] sm:$0xff]
    %v137 = vld [vmem:[%s3 + $0x48] sm:$0xff]
    %v138 = vld [vmem:[%s3 + $0x50] sm:$0xff]
    %v139 = vld [vmem:[%s3 + $0x58] sm:$0xff]
    %v140 = vld [vmem:[%s3 + $0x60] sm:$0xff]
    %v141 = vld [vmem:[%s3 + $0x68] sm:$0xff]
    %v142 = vld [vmem:[%s3 + $0x70] sm:$0xff]
    %v143 = vld [vmem:[%s3 + $0x78] sm:$0xff]
    %v144 = vld [vmem:[%s3 + $0x80] sm:$0x1]
    %v145 = vlaneseq
    %v146 = vshrl.u32 %v145, 7
    %v147 = vsub.s32 0, %v146
    %v148 = vrot.slane %v144, %v147
    %149 = vmatprep.subr.mxu0 0.0
    %150 = vmatpush1.msra.mxu0 %v143
    %151 = vmatprep.subr.mxu0 0.0
    %152 = vmatpush1.msra.mxu0 %v142
    %153 = vmatprep.subr.mxu0 0.0
    %154 = vmatpush1.msra.mxu0 %v141
    %155 = vmatprep.subr.mxu0 0.0
    %156 = vmatpush1.msra.mxu0 %v140
    %157 = vmatprep.subr.mxu0 0.0
    %158 = vmatpush1.msra.mxu0 %v139
    %159 = vmatprep.subr.mxu0 0.0
    %160 = vmatpush1.msra.mxu0 %v138
    %161 = vmatprep.subr.mxu0 0.0
    %162 = vmatpush1.msra.mxu0 %v137
    %163 = vmatprep.subr.mxu0 0.0
    %164 = vmatpush1.msra.mxu0 %v136
    %165 = vmatprep.subr.mxu0 0.0
    %166 = vmatpush1.msra.mxu0 %v135
    %167 = vmatprep.subr.mxu0 0.0
    %168 = vmatpush1.msra.mxu0 %v134
    %169 = vmatprep.subr.mxu0 0.0
    %170 = vmatpush1.msra.mxu0 %v133
    %171 = vmatprep.subr.mxu0 0.0
    %172 = vmatpush1.msra.mxu0 %v132
    %173 = vmatprep.subr.mxu0 0.0
    %174 = vmatpush1.msra.mxu0 %v131
    %175 = vmatprep.subr.mxu0 0.0
    %176 = vmatpush1.msra.mxu0 %v130
    %177 = vmatprep.subr.mxu0 0.0
    %178 = vmatpush1.msra.mxu0 %v129
    %179 = vmatprep.subr.mxu0 0.0
    %180 = vmatpush1.msra.mxu0 %v128
    %181 = vmatprep.subr.mxu0 0.0
    %182 = vmatpush2.msra.mxu0 0.0
    %183 = vmatprep.subr.mxu0 0.0
    %184 = vmatpush2.msra.mxu0 0.0
    %185 = vmatprep.subr.mxu0 0.0
    %186 = vmatpush2.msra.mxu0 0.0
    %187 = vmatprep.subr.mxu0 0.0
    %188 = vmatpush2.msra.mxu0 0.0
    %189 = vmatprep.subr.mxu0 0.0
    %190 = vmatpush2.msra.mxu0 0.0
    %191 = vmatprep.subr.mxu0 0.0
    %192 = vmatpush2.msra.mxu0 0.0
    %193 = vmatprep.subr.mxu0 0.0
    %194 = vmatpush2.msra.mxu0 0.0
    %195 = vmatprep.subr.mxu0 0.0
    %196 = vmatpush2.msra.mxu0 0.0
    %197 = vmatprep.subr.mxu0 0.0
    %198 = vmatpush2.msra.mxu0 0.0
    %199 = vmatprep.subr.mxu0 0.0
    %200 = vmatpush2.msra.mxu0 0.0
    %201 = vmatprep.subr.mxu0 0.0
    %202 = vmatpush2.msra.mxu0 0.0
    %203 = vmatprep.subr.mxu0 0.0
    %204 = vmatpush2.msra.mxu0 0.0
    %205 = vmatprep.subr.mxu0 0.0
    %206 = vmatpush2.msra.mxu0 0.0
    %207 = vmatprep.subr.mxu0 0.0
    %208 = vmatpush2.msra.mxu0 0.0
    %209 = vmatprep.subr.mxu0 0.0
    %210 = vmatpush2.msra.mxu0 0.0
    %211 = vmatprep.subr.mxu0 0.0
    %212 = vmatpush2.msra.mxu0 0.0
    %213 = vmatprep.mubr.f32.mxu0 0.0
    %214 = vmatmul.mubr.f32.gmra.mxu0 %v127
    %v215 = vpop.f32.mrf.mxu0
    %v216 = vadd.f32 %v148, %v215
    %v217 = vpop.f32.mrf.mxu0
    %218 = vdwg.mxu0
    %v219 = vxor.u32 %v216, 2147483648
    %v220 = vmul.f32 %v219, 1.442695
    %v221 = vpow.pop %v220
    %v222 = vadd.f32 %v221, 1.0
    %v223 = vrcp.pop %v222
    %v224 = vmul.f32 1.0, %v223
    %v225 = vmul.f32 %v216, %v224
    %v226 = vld [vmem:[%s4] sm:$0xff]
    %v227 = vld [vmem:[%s4 + $0x8] sm:$0xff]
    %v228 = vld [vmem:[%s4 + $0x10] sm:$0xff]
    %v229 = vld [vmem:[%s4 + $0x18] sm:$0xff]
    %v230 = vld [vmem:[%s4 + $0x20] sm:$0xff]
    %v231 = vld [vmem:[%s4 + $0x28] sm:$0xff]
    %v232 = vld [vmem:[%s4 + $0x30] sm:$0xff]
    %v233 = vld [vmem:[%s4 + $0x38] sm:$0xff]
    %v234 = vld [vmem:[%s4 + $0x40] sm:$0xff]
    %v235 = vld [vmem:[%s4 + $0x48] sm:$0xff]
    %v236 = vld [vmem:[%s4 + $0x50] sm:$0xff]
    %v237 = vld [vmem:[%s4 + $0x58] sm:$0xff]
    %v238 = vld [vmem:[%s4 + $0x60] sm:$0xff]
    %v239 = vld [vmem:[%s4 + $0x68] sm:$0xff]
    %v240 = vld [vmem:[%s4 + $0x70] sm:$0xff]
    %v241 = vld [vmem:[%s4 + $0x78] sm:$0xff]
    %v242 = vld [vmem:[%s4 + $0x80] sm:$0x1]
    %v243 = vlaneseq
    %v244 = vshrl.u32 %v243, 7
    %v245 = vsub.s32 0, %v244
    %v246 = vrot.slane %v242, %v245
    %247 = vmatprep.subr.mxu0 0.0
    %248 = vmatpush1.msra.mxu0 %v241
    %249 = vmatprep.subr.mxu0 0.0
    %250 = vmatpush1.msra.mxu0 %v240
    %251 = vmatprep.subr.mxu0 0.0
    %252 = vmatpush1.msra.mxu0 %v239
    %253 = vmatprep.subr.mxu0 0.0
    %254 = vmatpush1.msra.mxu0 %v238
    %255 = vmatprep.subr.mxu0 0.0
    %256 = vmatpush1.msra.mxu0 %v237
    %257 = vmatprep.subr.mxu0 0.0
    %258 = vmatpush1.msra.mxu0 %v236
    %259 = vmatprep.subr.mxu0 0.0
    %260 = vmatpush1.msra.mxu0 %v235
    %261 = vmatprep.subr.mxu0 0.0
    %262 = vmatpush1.msra.mxu0 %v234
    %263 = vmatprep.subr.mxu0 0.0
    %264 = vmatpush1.msra.mxu0 %v233
    %265 = vmatprep.subr.mxu0 0.0
    %266 = vmatpush1.msra.mxu0 %v232
    %267 = vmatprep.subr.mxu0 0.0
    %268 = vmatpush1.msra.mxu0 %v231
    %269 = vmatprep.subr.mxu0 0.0
    %270 = vmatpush1.msra.mxu0 %v230
    %271 = vmatprep.subr.mxu0 0.0
    %272 = vmatpush1.msra.mxu0 %v229
    %273 = vmatprep.subr.mxu0 0.0
    %274 = vmatpush1.msra.mxu0 %v228
    %275 = vmatprep.subr.mxu0 0.0
    %276 = vmatpush1.msra.mxu0 %v227
    %277 = vmatprep.subr.mxu0 0.0
    %278 = vmatpush1.msra.mxu0 %v226
    %279 = vmatprep.subr.mxu0 0.0
    %280 = vmatpush2.msra.mxu0 0.0
    %281 = vmatprep.subr.mxu0 0.0
    %282 = vmatpush2.msra.mxu0 0.0
    %283 = vmatprep.subr.mxu0 0.0
    %284 = vmatpush2.msra.mxu0 0.0
    %285 = vmatprep.subr.mxu0 0.0
    %286 = vmatpush2.msra.mxu0 0.0
    %287 = vmatprep.subr.mxu0 0.0
    %288 = vmatpush2.msra.mxu0 0.0
    %289 = vmatprep.subr.mxu0 0.0
    %290 = vmatpush2.msra.mxu0 0.0
    %291 = vmatprep.subr.mxu0 0.0
    %292 = vmatpush2.msra.mxu0 0.0
    %293 = vmatprep.subr.mxu0 0.0
    %294 = vmatpush2.msra.mxu0 0.0
    %295 = vmatprep.subr.mxu0 0.0
    %296 = vmatpush2.msra.mxu0 0.0
    %297 = vmatprep.subr.mxu0 0.0
    %298 = vmatpush2.msra.mxu0 0.0
    %299 = vmatprep.subr.mxu0 0.0
    %300 = vmatpush2.msra.mxu0 0.0
    %301 = vmatprep.subr.mxu0 0.0
    %302 = vmatpush2.msra.mxu0 0.0
    %303 = vmatprep.subr.mxu0 0.0
    %304 = vmatpush2.msra.mxu0 0.0
    %305 = vmatprep.subr.mxu0 0.0
    %306 = vmatpush2.msra.mxu0 0.0
    %307 = vmatprep.subr.mxu0 0.0
    %308 = vmatpush2.msra.mxu0 0.0
    %309 = vmatprep.subr.mxu0 0.0
    %310 = vmatpush2.msra.mxu0 0.0
    %311 = vmatprep.mubr.f32.mxu0 0.0
    %312 = vmatmul.mubr.f32.gmra.mxu0 %v225
    %v313 = vpop.f32.mrf.mxu0
    %v314 = vadd.f32 %v246, %v313
    %v315 = vpop.f32.mrf.mxu0
    %316 = vdwg.mxu0
    %vm317 = vcmask 31744
    %318 = vst.msk [vmem:[%s5] sm:$0xff] %vm317, %v314
    // Predicated region
    $region26: #{qc_network_forward.1} parent=1 // pred_check
      _
    $region27: #{qc_network_forward.1} parent=1 // pred_check_branch
      %320 = sbr.rel (0) target = $region29
    $region28: #{qc_network_forward.1} parent=1 // pred_region
      _
    $region29: #{qc_network_forward.1} parent=1 // pred_fallthru
      _
    // Predicated region
    $region30: #{qc_network_forward.1} parent=1 // pred_check
      _
    $region31: #{qc_network_forward.1} parent=1 // pred_check_branch
      %322 = sbr.rel (0) target = $region33
    $region32: #{qc_network_forward.1} parent=1 // pred_region
      _
    $region33: #{qc_network_forward.1} parent=1 // pred_fallthru
      _
    %323 = vsyncpa [#allocation3], 1

</llo_original>
